<compile_context>
chip_gen: v7x
topology: tpu7x:2x2x1
jax: 0.10.0
libtpu: 0.0.40
codegen_flags: <defaults>
</compile_context>

<pallas_src>
import jax
import jax.numpy as jnp
from jax.experimental import pallas as pl
from jax.experimental.pallas import tpu as pltpu

INTRINSIC_DIM = 8
IN_FEATURES = 32
OUT_FEATURES = 16
BATCH = 8


# ----------------------------------------------------------------------------
# Fused kernel: intrinsic projection (VPU) + wrapped Linear forward (MXU).
#   v_ref   : (D, 1)        SMEM   — the trainable intrinsic vector V
#   x_ref   : (B, IN)       VMEM
#   w0t_ref : (IN, OUT)     VMEM   — W0^T (pre-permuted on host)
#   rwt_ref : (D, IN, OUT)  VMEM   — random matrix for W, pre-permuted to W^T layout
#   b0_ref  : (1, OUT)      VMEM
#   rbt_ref : (D, 1, OUT)   VMEM   — random matrix for b, pre-permuted
#   o_ref   : (B, OUT)      VMEM
# ----------------------------------------------------------------------------
def _densewrap_fused_kernel(v_ref, x_ref, w0t_ref, rwt_ref, b0_ref, rbt_ref, o_ref):
    # theta = theta0 + sum_d R[d] * V[d]  — pure VPU broadcast-FMA, MXU untouched.
    w_t = w0t_ref[...]                      # (IN, OUT) == W^T accumulator (vregs)
    b = b0_ref[...]                         # (1, OUT)
    for d in range(INTRINSIC_DIM):          # static unroll, D = 8
        vd = v_ref[d, 0]                    # scalar load from SMEM
        w_t = w_t + rwt_ref[d] * vd
        b = b + rbt_ref[d] * vd
    # Wrapped nn.Linear forward: y = x @ W^T + b ; theta never leaves on-chip memory.
    y = jnp.dot(x_ref[...], w_t, preferred_element_type=jnp.float32)
    o_ref[...] = y + b


def densewrap_forward(x, v, w0_t, rw_t, b0_row, rb_t):
    B = x.shape[0]
    return pl.pallas_call(
        _densewrap_fused_kernel,
        out_shape=jax.ShapeDtypeStruct((B, OUT_FEATURES), jnp.float32),
        in_specs=[
            pl.BlockSpec(memory_space=pltpu.MemorySpace.SMEM),   # V (D, 1) scalars
            pl.BlockSpec(memory_space=pltpu.MemorySpace.VMEM),   # x
            pl.BlockSpec(memory_space=pltpu.MemorySpace.VMEM),   # W0^T
            pl.BlockSpec(memory_space=pltpu.MemorySpace.VMEM),   # R_w (W^T layout)
            pl.BlockSpec(memory_space=pltpu.MemorySpace.VMEM),   # b0
            pl.BlockSpec(memory_space=pltpu.MemorySpace.VMEM),   # R_b
        ],
        out_specs=pl.BlockSpec(memory_space=pltpu.MemorySpace.VMEM),
    )(v, x, w0_t, rw_t, b0_row, rb_t)


def prepare_params(w0, b0, rw, rb):
    """One-time re-layout (setup time, not on the forward critical path):
    present everything in W^T (IN, OUT) order so the kernel needs zero transpose glue."""
    w0_t = jnp.transpose(w0)                                              # (IN, OUT)
    rw_t = jnp.transpose(rw, (2, 1, 0))                                   # (D, IN, OUT)
    b0_row = b0.reshape(1, OUT_FEATURES)                                  # (1, OUT)
    rb_t = jnp.transpose(rb).reshape(INTRINSIC_DIM, 1, OUT_FEATURES)      # (D, 1, OUT)
    return w0_t, rw_t, b0_row, rb_t


# ----------------------------------------------------------------------------
# Pure-JAX reference (mirrors the PyTorch DenseWrap.forward exactly).
# ----------------------------------------------------------------------------
def densewrap_reference(x, v, w0, b0, rw, rb):
    theta_w = w0 + jnp.squeeze(rw @ v, -1)      # (OUT, IN)
    theta_b = b0 + jnp.squeeze(rb @ v, -1)      # (OUT,)
    return x @ theta_w.T + theta_b


if __name__ == "__main__":
    key = jax.random.PRNGKey(0)
    kx, kw, kb, krw, krb, kv = jax.random.split(key, 6)

    x = jax.random.normal(kx, (BATCH, IN_FEATURES), jnp.float32)

    # Deterministic "initial_value" of the wrapped Linear's parameters.
    w0 = jax.random.normal(kw, (OUT_FEATURES, IN_FEATURES), jnp.float32) / IN_FEATURES ** 0.5
    b0 = jax.random.normal(kb, (OUT_FEATURES,), jnp.float32) / IN_FEATURES ** 0.5

    # random_matrix[name] = randn(param_shape + (intrinsic_dim,)) / intrinsic_dim**0.5
    rw = jax.random.normal(
        krw, (OUT_FEATURES, IN_FEATURES, INTRINSIC_DIM), jnp.float32) / INTRINSIC_DIM ** 0.5
    rb = jax.random.normal(
        krb, (OUT_FEATURES, INTRINSIC_DIM), jnp.float32) / INTRINSIC_DIM ** 0.5

    # The module registers V = zeros((D, 1)); use a small nonzero deterministic V so the
    # projection path is actually exercised (forward formula unchanged).
    v = 0.01 * jax.random.normal(kv, (INTRINSIC_DIM, 1), jnp.float32)

    # One-time parameter re-layout (equivalent to how the wrapper stores its buffers).
    w0_t, rw_t, b0_row, rb_t = prepare_params(w0, b0, rw, rb)

    out = jax.block_until_ready(densewrap_forward(x, v, w0_t, rw_t, b0_row, rb_t))

    ref = densewrap_reference(x, v, w0, b0, rw, rb)
    assert out.shape == (BATCH, OUT_FEATURES)
    assert jnp.allclose(out, ref, atol=1e-5, rtol=1e-5)
    print("KERNEL_OK")
</pallas_src>

<mosaic_0001>
module attributes {stable_mosaic.version = 11 : i64} {
  func.func @_densewrap_fused_kernel(%arg0: memref<8x1xf32, #tpu.memory_space<smem>>, %arg1: memref<8x32xf32, #tpu.memory_space<vmem>>, %arg2: memref<32x16xf32, #tpu.memory_space<vmem>>, %arg3: memref<8x32x16xf32, #tpu.memory_space<vmem>>, %arg4: memref<1x16xf32, #tpu.memory_space<vmem>>, %arg5: memref<8x1x16xf32, #tpu.memory_space<vmem>>, %arg6: memref<8x16xf32, #tpu.memory_space<vmem>>) attributes {dimension_semantics = [], scalar_prefetch = 0 : i64, scratch_operands = 0 : i64, tpu.core_type = #tpu.core_type<tc>} {
    %c0 = arith.constant 0 : index
    %c0_0 = arith.constant 0 : index
    %0 = vector.load %arg2[%c0, %c0_0] : memref<32x16xf32, #tpu.memory_space<vmem>>, vector<32x16xf32>
    %c0_1 = arith.constant 0 : index
    %c0_2 = arith.constant 0 : index
    %1 = vector.load %arg4[%c0_1, %c0_2] : memref<1x16xf32, #tpu.memory_space<vmem>>, vector<1x16xf32>
    %c0_3 = arith.constant 0 : index
    %c0_4 = arith.constant 0 : index
    %2 = memref.load %arg0[%c0_3, %c0_4] : memref<8x1xf32, #tpu.memory_space<smem>>
    %c0_5 = arith.constant 0 : index
    %c0_6 = arith.constant 0 : index
    %c0_7 = arith.constant 0 : index
    %3 = vector.load %arg3[%c0_5, %c0_6, %c0_7] : memref<8x32x16xf32, #tpu.memory_space<vmem>>, vector<1x32x16xf32>
    %4 = vector.shape_cast %3 : vector<1x32x16xf32> to vector<32x16xf32>
    %5 = vector.broadcast %2 : f32 to vector<32x16xf32>
    %6 = arith.mulf %4, %5 : vector<32x16xf32>
    %7 = arith.addf %0, %6 : vector<32x16xf32>
    %c0_8 = arith.constant 0 : index
    %c0_9 = arith.constant 0 : index
    %c0_10 = arith.constant 0 : index
    %8 = vector.load %arg5[%c0_8, %c0_9, %c0_10] : memref<8x1x16xf32, #tpu.memory_space<vmem>>, vector<1x1x16xf32>
    %9 = vector.shape_cast %8 : vector<1x1x16xf32> to vector<1x16xf32>
    %10 = vector.broadcast %2 : f32 to vector<1x16xf32>
    %11 = arith.mulf %9, %10 : vector<1x16xf32>
    %12 = arith.addf %1, %11 : vector<1x16xf32>
    %c1 = arith.constant 1 : index
    %c0_11 = arith.constant 0 : index
    %13 = memref.load %arg0[%c1, %c0_11] : memref<8x1xf32, #tpu.memory_space<smem>>
    %c1_12 = arith.constant 1 : index
    %c0_13 = arith.constant 0 : index
    %c0_14 = arith.constant 0 : index
    %14 = vector.load %arg3[%c1_12, %c0_13, %c0_14] : memref<8x32x16xf32, #tpu.memory_space<vmem>>, vector<1x32x16xf32>
    %15 = vector.shape_cast %14 : vector<1x32x16xf32> to vector<32x16xf32>
    %16 = vector.broadcast %13 : f32 to vector<32x16xf32>
    %17 = arith.mulf %15, %16 : vector<32x16xf32>
    %18 = arith.addf %7, %17 : vector<32x16xf32>
    %c1_15 = arith.constant 1 : index
    %c0_16 = arith.constant 0 : index
    %c0_17 = arith.constant 0 : index
    %19 = vector.load %arg5[%c1_15, %c0_16, %c0_17] : memref<8x1x16xf32, #tpu.memory_space<vmem>>, vector<1x1x16xf32>
    %20 = vector.shape_cast %19 : vector<1x1x16xf32> to vector<1x16xf32>
    %21 = vector.broadcast %13 : f32 to vector<1x16xf32>
    %22 = arith.mulf %20, %21 : vector<1x16xf32>
    %23 = arith.addf %12, %22 : vector<1x16xf32>
    %c2 = arith.constant 2 : index
    %c0_18 = arith.constant 0 : index
    %24 = memref.load %arg0[%c2, %c0_18] : memref<8x1xf32, #tpu.memory_space<smem>>
    %c2_19 = arith.constant 2 : index
    %c0_20 = arith.constant 0 : index
    %c0_21 = arith.constant 0 : index
    %25 = vector.load %arg3[%c2_19, %c0_20, %c0_21] : memref<8x32x16xf32, #tpu.memory_space<vmem>>, vector<1x32x16xf32>
    %26 = vector.shape_cast %25 : vector<1x32x16xf32> to vector<32x16xf32>
    %27 = vector.broadcast %24 : f32 to vector<32x16xf32>
    %28 = arith.mulf %26, %27 : vector<32x16xf32>
    %29 = arith.addf %18, %28 : vector<32x16xf32>
    %c2_22 = arith.constant 2 : index
    %c0_23 = arith.constant 0 : index
    %c0_24 = arith.constant 0 : index
    %30 = vector.load %arg5[%c2_22, %c0_23, %c0_24] : memref<8x1x16xf32, #tpu.memory_space<vmem>>, vector<1x1x16xf32>
    %31 = vector.shape_cast %30 : vector<1x1x16xf32> to vector<1x16xf32>
    %32 = vector.broadcast %24 : f32 to vector<1x16xf32>
    %33 = arith.mulf %31, %32 : vector<1x16xf32>
    %34 = arith.addf %23, %33 : vector<1x16xf32>
    %c3 = arith.constant 3 : index
    %c0_25 = arith.constant 0 : index
    %35 = memref.load %arg0[%c3, %c0_25] : memref<8x1xf32, #tpu.memory_space<smem>>
    %c3_26 = arith.constant 3 : index
    %c0_27 = arith.constant 0 : index
    %c0_28 = arith.constant 0 : index
    %36 = vector.load %arg3[%c3_26, %c0_27, %c0_28] : memref<8x32x16xf32, #tpu.memory_space<vmem>>, vector<1x32x16xf32>
    %37 = vector.shape_cast %36 : vector<1x32x16xf32> to vector<32x16xf32>
    %38 = vector.broadcast %35 : f32 to vector<32x16xf32>
    %39 = arith.mulf %37, %38 : vector<32x16xf32>
    %40 = arith.addf %29, %39 : vector<32x16xf32>
    %c3_29 = arith.constant 3 : index
    %c0_30 = arith.constant 0 : index
    %c0_31 = arith.constant 0 : index
    %41 = vector.load %arg5[%c3_29, %c0_30, %c0_31] : memref<8x1x16xf32, #tpu.memory_space<vmem>>, vector<1x1x16xf32>
    %42 = vector.shape_cast %41 : vector<1x1x16xf32> to vector<1x16xf32>
    %43 = vector.broadcast %35 : f32 to vector<1x16xf32>
    %44 = arith.mulf %42, %43 : vector<1x16xf32>
    %45 = arith.addf %34, %44 : vector<1x16xf32>
    %c4 = arith.constant 4 : index
    %c0_32 = arith.constant 0 : index
    %46 = memref.load %arg0[%c4, %c0_32] : memref<8x1xf32, #tpu.memory_space<smem>>
    %c4_33 = arith.constant 4 : index
    %c0_34 = arith.constant 0 : index
    %c0_35 = arith.constant 0 : index
    %47 = vector.load %arg3[%c4_33, %c0_34, %c0_35] : memref<8x32x16xf32, #tpu.memory_space<vmem>>, vector<1x32x16xf32>
    %48 = vector.shape_cast %47 : vector<1x32x16xf32> to vector<32x16xf32>
    %49 = vector.broadcast %46 : f32 to vector<32x16xf32>
    %50 = arith.mulf %48, %49 : vector<32x16xf32>
    %51 = arith.addf %40, %50 : vector<32x16xf32>
    %c4_36 = arith.constant 4 : index
    %c0_37 = arith.constant 0 : index
    %c0_38 = arith.constant 0 : index
    %52 = vector.load %arg5[%c4_36, %c0_37, %c0_38] : memref<8x1x16xf32, #tpu.memory_space<vmem>>, vector<1x1x16xf32>
    %53 = vector.shape_cast %52 : vector<1x1x16xf32> to vector<1x16xf32>
    %54 = vector.broadcast %46 : f32 to vector<1x16xf32>
    %55 = arith.mulf %53, %54 : vector<1x16xf32>
    %56 = arith.addf %45, %55 : vector<1x16xf32>
    %c5 = arith.constant 5 : index
    %c0_39 = arith.constant 0 : index
    %57 = memref.load %arg0[%c5, %c0_39] : memref<8x1xf32, #tpu.memory_space<smem>>
    %c5_40 = arith.constant 5 : index
    %c0_41 = arith.constant 0 : index
    %c0_42 = arith.constant 0 : index
    %58 = vector.load %arg3[%c5_40, %c0_41, %c0_42] : memref<8x32x16xf32, #tpu.memory_space<vmem>>, vector<1x32x16xf32>
    %59 = vector.shape_cast %58 : vector<1x32x16xf32> to vector<32x16xf32>
    %60 = vector.broadcast %57 : f32 to vector<32x16xf32>
    %61 = arith.mulf %59, %60 : vector<32x16xf32>
    %62 = arith.addf %51, %61 : vector<32x16xf32>
    %c5_43 = arith.constant 5 : index
    %c0_44 = arith.constant 0 : index
    %c0_45 = arith.constant 0 : index
    %63 = vector.load %arg5[%c5_43, %c0_44, %c0_45] : memref<8x1x16xf32, #tpu.memory_space<vmem>>, vector<1x1x16xf32>
    %64 = vector.shape_cast %63 : vector<1x1x16xf32> to vector<1x16xf32>
    %65 = vector.broadcast %57 : f32 to vector<1x16xf32>
    %66 = arith.mulf %64, %65 : vector<1x16xf32>
    %67 = arith.addf %56, %66 : vector<1x16xf32>
    %c6 = arith.constant 6 : index
    %c0_46 = arith.constant 0 : index
    %68 = memref.load %arg0[%c6, %c0_46] : memref<8x1xf32, #tpu.memory_space<smem>>
    %c6_47 = arith.constant 6 : index
    %c0_48 = arith.constant 0 : index
    %c0_49 = arith.constant 0 : index
    %69 = vector.load %arg3[%c6_47, %c0_48, %c0_49] : memref<8x32x16xf32, #tpu.memory_space<vmem>>, vector<1x32x16xf32>
    %70 = vector.shape_cast %69 : vector<1x32x16xf32> to vector<32x16xf32>
    %71 = vector.broadcast %68 : f32 to vector<32x16xf32>
    %72 = arith.mulf %70, %71 : vector<32x16xf32>
    %73 = arith.addf %62, %72 : vector<32x16xf32>
    %c6_50 = arith.constant 6 : index
    %c0_51 = arith.constant 0 : index
    %c0_52 = arith.constant 0 : index
    %74 = vector.load %arg5[%c6_50, %c0_51, %c0_52] : memref<8x1x16xf32, #tpu.memory_space<vmem>>, vector<1x1x16xf32>
    %75 = vector.shape_cast %74 : vector<1x1x16xf32> to vector<1x16xf32>
    %76 = vector.broadcast %68 : f32 to vector<1x16xf32>
    %77 = arith.mulf %75, %76 : vector<1x16xf32>
    %78 = arith.addf %67, %77 : vector<1x16xf32>
    %c7 = arith.constant 7 : index
    %c0_53 = arith.constant 0 : index
    %79 = memref.load %arg0[%c7, %c0_53] : memref<8x1xf32, #tpu.memory_space<smem>>
    %c7_54 = arith.constant 7 : index
    %c0_55 = arith.constant 0 : index
    %c0_56 = arith.constant 0 : index
    %80 = vector.load %arg3[%c7_54, %c0_55, %c0_56] : memref<8x32x16xf32, #tpu.memory_space<vmem>>, vector<1x32x16xf32>
    %81 = vector.shape_cast %80 : vector<1x32x16xf32> to vector<32x16xf32>
    %82 = vector.broadcast %79 : f32 to vector<32x16xf32>
    %83 = arith.mulf %81, %82 : vector<32x16xf32>
    %84 = arith.addf %73, %83 : vector<32x16xf32>
    %c7_57 = arith.constant 7 : index
    %c0_58 = arith.constant 0 : index
    %c0_59 = arith.constant 0 : index
    %85 = vector.load %arg5[%c7_57, %c0_58, %c0_59] : memref<8x1x16xf32, #tpu.memory_space<vmem>>, vector<1x1x16xf32>
    %86 = vector.shape_cast %85 : vector<1x1x16xf32> to vector<1x16xf32>
    %87 = vector.broadcast %79 : f32 to vector<1x16xf32>
    %88 = arith.mulf %86, %87 : vector<1x16xf32>
    %89 = arith.addf %78, %88 : vector<1x16xf32>
    %c0_60 = arith.constant 0 : index
    %c0_61 = arith.constant 0 : index
    %90 = vector.load %arg1[%c0_60, %c0_61] : memref<8x32xf32, #tpu.memory_space<vmem>>, vector<8x32xf32>
    %cst = arith.constant dense<0.000000e+00> : vector<8x16xf32>
    %91 = tpu.matmul %90, %84, %cst {dimension_numbers = #tpu.dot_dimension_numbers<[1], [0], [0], [1], [0, 0, 1, 1], [], []>} : vector<8x32xf32>, vector<32x16xf32>, vector<8x16xf32> -> vector<8x16xf32>
    %92 = vector.broadcast %89 : vector<1x16xf32> to vector<8x16xf32>
    %93 = arith.addf %91, %92 : vector<8x16xf32>
    %c0_62 = arith.constant 0 : index
    %c0_63 = arith.constant 0 : index
    %94 = vector.load %arg6[%c0_62, %c0_63] : memref<8x16xf32, #tpu.memory_space<vmem>>, vector<8x16xf32>
    tpu.vector_store %arg6[%c0_62, %c0_63], %93 {strides = array<i32>} : memref<8x16xf32, #tpu.memory_space<vmem>>, vector<8x16xf32>,
    return
  }
}

</mosaic_0001>

<llo_original>
// kernel: tpu_custom_call.1
$region0: #{tpu_custom_call.1}
  #allocation0 [shape = 'u32[]', space=smem, size = 0x4, offset = 0x4, fixed_abs, tag = 'smem constant byte address 0x4 - core index']
  #allocation1 [shape = 'u32[144,128]{1,0:T(1,128)}', space=vmem, size = 0x12000, scoped, tag = 'internal scratch']
  %s0 = inlined_call_operand.vmem [shape: f32[8,1], index: 0, kind: input, shape index: {}]
  %s1 = inlined_call_operand.vmem [shape: f32[8,32], index: 1, kind: input, shape index: {}]
  %s2 = inlined_call_operand.vmem [shape: f32[32,16], index: 2, kind: input, shape index: {}]
  %s3 = inlined_call_operand.vmem [shape: f32[8,32,16], index: 3, kind: input, shape index: {}]
  %s4 = inlined_call_operand.vmem [shape: f32[1,16], index: 4, kind: input, shape index: {}]
  %s5 = inlined_call_operand.vmem [shape: f32[8,1,16], index: 5, kind: input, shape index: {}]
  %s6 = inlined_call_operand.hbm [shape: f32[8,16], index: 6, kind: output, shape index: {}]
  %s7 = sld [smem:[#allocation0]]
  $region38: #{tpu_custom_call.1} parent=0
    _
  %s9 = ssub.s32 1, %s7
  %s10 = scalar_select 0, %s9, %s7
  $region1: #{tpu_custom_call.1} parent=0
    #allocation2 [shape = 'u8[4096]{0}', space=smem, size = 0x1000, scoped, tag = 'input window, operand 0, single buffered']
    #allocation3 [shape = 's32[1]{0}', space=sflag, size = 0x4, scoped, tag = 'scoped memory for tpu_custom_call.1']
    #allocation4 [shape = 's32[1]{0}', space=sflag, size = 0x4, scoped, tag = 'scoped memory for tpu_custom_call.1']
    #allocation5 [shape = 'u8[4096]{0}', space=vmem, size = 0x1000, scoped, tag = 'output window, operand 0, single buffered']
    %11 = vsyncpa [#allocation4], 0
    %12 = vsyncpa [#allocation3], 0
    // Predicated region
    $region2: #{tpu_custom_call.1} parent=1 // pred_check
      _
    $region3: #{tpu_custom_call.1} parent=1 // pred_check_branch
      %14 = sbr.rel (0) target = $region5
    $region4: #{tpu_custom_call.1} parent=1 // pred_region
      %s16 = ssub.s32 128, 128
      %17 = vsyncadd [#allocation4], %s16
      %s19 = sshll.u32 %s0, 4
      %s20 = int_to_ptr.vmem [resolvable:$true] %s19
      %22 = dma.vmem_to_smem %s20, 128, [#allocation2], [#allocation4]
    $region5: #{tpu_custom_call.1} parent=1 // pred_fallthru
      _
    // Predicated region
    $region6: #{tpu_custom_call.1} parent=1 // pred_check
      _
    $region7: #{tpu_custom_call.1} parent=1 // pred_check_branch
      %24 = sbr.rel (0) target = $region9
    $region8: #{tpu_custom_call.1} parent=1 // pred_region
      _
    $region9: #{tpu_custom_call.1} parent=1 // pred_fallthru
      _
    // Predicated region
    $region10: #{tpu_custom_call.1} parent=1 // pred_check
      _
    $region11: #{tpu_custom_call.1} parent=1 // pred_check_branch
      %26 = sbr.rel (0) target = $region13
    $region12: #{tpu_custom_call.1} parent=1 // pred_region
      _
    $region13: #{tpu_custom_call.1} parent=1 // pred_fallthru
      _
    // Predicated region
    $region14: #{tpu_custom_call.1} parent=1 // pred_check
      _
    $region15: #{tpu_custom_call.1} parent=1 // pred_check_branch
      %28 = sbr.rel (0) target = $region17
    $region16: #{tpu_custom_call.1} parent=1 // pred_region
      _
    $region17: #{tpu_custom_call.1} parent=1 // pred_fallthru
      _
    // Predicated region
    $region18: #{tpu_custom_call.1} parent=1 // pred_check
      _
    $region19: #{tpu_custom_call.1} parent=1 // pred_check_branch
      %30 = sbr.rel (0) target = $region21
    $region20: #{tpu_custom_call.1} parent=1 // pred_region
      _
    $region21: #{tpu_custom_call.1} parent=1 // pred_fallthru
      _
    // Predicated region
    $region22: #{tpu_custom_call.1} parent=1 // pred_check
      _
    $region23: #{tpu_custom_call.1} parent=1 // pred_check_branch
      %32 = sbr.rel (0) target = $region25
    $region24: #{tpu_custom_call.1} parent=1 // pred_region
      _
    $region25: #{tpu_custom_call.1} parent=1 // pred_fallthru
      _
    // Predicated region
    $region26: #{tpu_custom_call.1} parent=1 // pred_check
      _
    $region27: #{tpu_custom_call.1} parent=1 // pred_check_branch
      %34 = sbr.rel (0) target = $region29
    $region28: #{tpu_custom_call.1} parent=1 // pred_region
      %35 = dma.done [#allocation4], 128
    $region29: #{tpu_custom_call.1} parent=1 // pred_fallthru
      _
    %36 = sfence
    %v37 = vld [vmem:[%s2] sm:$0xff]
    %v38 = vld [vmem:[%s2 + $0x8] sm:$0xff]
    %v39 = vld [vmem:[%s2 + $0x10] sm:$0xff]
    %v40 = vld [vmem:[%s2 + $0x18] sm:$0xff]
    %v41 = vld [vmem:[%s4] sm:$0x1]
    %s42 = sld [smem:[#allocation2]]
    %v43 = vld [vmem:[%s3] sm:$0xff]
    %v44 = vld [vmem:[%s3 + $0x8] sm:$0xff]
    %v45 = vld [vmem:[%s3 + $0x10] sm:$0xff]
    %v46 = vld [vmem:[%s3 + $0x18] sm:$0xff]
    %v47 = vstv %s42
    %v48 = vmul.f32 %v43, %v47
    %v49 = vmul.f32 %v44, %v47
    %v50 = vmul.f32 %v45, %v47
    %v51 = vmul.f32 %v46, %v47
    %v52 = vadd.f32 %v37, %v48
    %v53 = vadd.f32 %v38, %v49
    %v54 = vadd.f32 %v39, %v50
    %v55 = vadd.f32 %v40, %v51
    %v56 = vld [vmem:[%s5] sm:$0x1]
    %v57 = vmul.f32 %v56, %v47
    %v58 = vadd.f32 %v41, %v57
    %s59 = sld [smem:[#allocation2 + $0x80]]
    %s60 = scalar_lea.vmem %s3, 32
    %v61 = vld [vmem:[%s60] sm:$0xff]
    %v62 = vld [vmem:[%s60 + $0x8] sm:$0xff]
    %v63 = vld [vmem:[%s60 + $0x10] sm:$0xff]
    %v64 = vld [vmem:[%s60 + $0x18] sm:$0xff]
    %v65 = vstv %s59
    %v66 = vmul.f32 %v61, %v65
    %v67 = vmul.f32 %v62, %v65
    %v68 = vmul.f32 %v63, %v65
    %v69 = vmul.f32 %v64, %v65
    %v70 = vadd.f32 %v52, %v66
    %v71 = vadd.f32 %v53, %v67
    %v72 = vadd.f32 %v54, %v68
    %v73 = vadd.f32 %v55, %v69
    %s74 = scalar_lea.vmem %s5, 1
    %v75 = vld [vmem:[%s74] sm:$0x1]
    %v76 = vmul.f32 %v75, %v65
    %v77 = vadd.f32 %v58, %v76
    %s78 = sld [smem:[#allocation2 + $0x100]]
    %s79 = scalar_lea.vmem %s3, 64
    %v80 = vld [vmem:[%s79] sm:$0xff]
    %v81 = vld [vmem:[%s79 + $0x8] sm:$0xff]
    %v82 = vld [vmem:[%s79 + $0x10] sm:$0xff]
    %v83 = vld [vmem:[%s79 + $0x18] sm:$0xff]
    %v84 = vstv %s78
    %v85 = vmul.f32 %v80, %v84
    %v86 = vmul.f32 %v81, %v84
    %v87 = vmul.f32 %v82, %v84
    %v88 = vmul.f32 %v83, %v84
    %v89 = vadd.f32 %v70, %v85
    %v90 = vadd.f32 %v71, %v86
    %v91 = vadd.f32 %v72, %v87
    %v92 = vadd.f32 %v73, %v88
    %s93 = scalar_lea.vmem %s5, 2
    %v94 = vld [vmem:[%s93] sm:$0x1]
    %v95 = vmul.f32 %v94, %v84
    %v96 = vadd.f32 %v77, %v95
    %s97 = sld [smem:[#allocation2 + $0x180]]
    %s98 = scalar_lea.vmem %s3, 96
    %v99 = vld [vmem:[%s98] sm:$0xff]
    %v100 = vld [vmem:[%s98 + $0x8] sm:$0xff]
    %v101 = vld [vmem:[%s98 + $0x10] sm:$0xff]
    %v102 = vld [vmem:[%s98 + $0x18] sm:$0xff]
    %v103 = vstv %s97
    %v104 = vmul.f32 %v99, %v103
    %v105 = vmul.f32 %v100, %v103
    %v106 = vmul.f32 %v101, %v103
    %v107 = vmul.f32 %v102, %v103
    %v108 = vadd.f32 %v89, %v104
    %v109 = vadd.f32 %v90, %v105
    %v110 = vadd.f32 %v91, %v106
    %v111 = vadd.f32 %v92, %v107
    %s112 = scalar_lea.vmem %s5, 3
    %v113 = vld [vmem:[%s112] sm:$0x1]
    %v114 = vmul.f32 %v113, %v103
    %v115 = vadd.f32 %v96, %v114
    %s116 = sld [smem:[#allocation2 + $0x200]]
    %s117 = scalar_lea.vmem %s3, 128
    %v118 = vld [vmem:[%s117] sm:$0xff]
    %v119 = vld [vmem:[%s117 + $0x8] sm:$0xff]
    %v120 = vld [vmem:[%s117 + $0x10] sm:$0xff]
    %v121 = vld [vmem:[%s117 + $0x18] sm:$0xff]
    %v122 = vstv %s116
    %v123 = vmul.f32 %v118, %v122
    %v124 = vmul.f32 %v119, %v122
    %v125 = vmul.f32 %v120, %v122
    %v126 = vmul.f32 %v121, %v122
    %v127 = vadd.f32 %v108, %v123
    %v128 = vadd.f32 %v109, %v124
    %v129 = vadd.f32 %v110, %v125
    %v130 = vadd.f32 %v111, %v126
    %s131 = scalar_lea.vmem %s5, 4
    %v132 = vld [vmem:[%s131] sm:$0x1]
    %v133 = vmul.f32 %v132, %v122
    %v134 = vadd.f32 %v115, %v133
    %s135 = sld [smem:[#allocation2 + $0x280]]
    %s136 = scalar_lea.vmem %s3, 160
    %v137 = vld [vmem:[%s136] sm:$0xff]
    %v138 = vld [vmem:[%s136 + $0x8] sm:$0xff]
    %v139 = vld [vmem:[%s136 + $0x10] sm:$0xff]
    %v140 = vld [vmem:[%s136 + $0x18] sm:$0xff]
    %v141 = vstv %s135
    %v142 = vmul.f32 %v137, %v141
    %v143 = vmul.f32 %v138, %v141
    %v144 = vmul.f32 %v139, %v141
    %v145 = vmul.f32 %v140, %v141
    %v146 = vadd.f32 %v127, %v142
    %v147 = vadd.f32 %v128, %v143
    %v148 = vadd.f32 %v129, %v144
    %v149 = vadd.f32 %v130, %v145
    %s150 = scalar_lea.vmem %s5, 5
    %v151 = vld [vmem:[%s150] sm:$0x1]
    %v152 = vmul.f32 %v151, %v141
    %v153 = vadd.f32 %v134, %v152
    %s154 = sld [smem:[#allocation2 + $0x300]]
    %s155 = scalar_lea.vmem %s3, 192
    %v156 = vld [vmem:[%s155] sm:$0xff]
    %v157 = vld [vmem:[%s155 + $0x8] sm:$0xff]
    %v158 = vld [vmem:[%s155 + $0x10] sm:$0xff]
    %v159 = vld [vmem:[%s155 + $0x18] sm:$0xff]
    %v160 = vstv %s154
    %v161 = vmul.f32 %v156, %v160
    %v162 = vmul.f32 %v157, %v160
    %v163 = vmul.f32 %v158, %v160
    %v164 = vmul.f32 %v159, %v160
    %v165 = vadd.f32 %v146, %v161
    %v166 = vadd.f32 %v147, %v162
    %v167 = vadd.f32 %v148, %v163
    %v168 = vadd.f32 %v149, %v164
    %s169 = scalar_lea.vmem %s5, 6
    %v170 = vld [vmem:[%s169] sm:$0x1]
    %v171 = vmul.f32 %v170, %v160
    %v172 = vadd.f32 %v153, %v171
    %s173 = sld [smem:[#allocation2 + $0x380]]
    %s174 = scalar_lea.vmem %s3, 224
    %v175 = vld [vmem:[%s174] sm:$0xff]
    %v176 = vld [vmem:[%s174 + $0x8] sm:$0xff]
    %v177 = vld [vmem:[%s174 + $0x10] sm:$0xff]
    %v178 = vld [vmem:[%s174 + $0x18] sm:$0xff]
    %v179 = vstv %s173
    %v180 = vmul.f32 %v175, %v179
    %v181 = vmul.f32 %v176, %v179
    %v182 = vmul.f32 %v177, %v179
    %v183 = vmul.f32 %v178, %v179
    %v184 = vadd.f32 %v165, %v180
    %v185 = vadd.f32 %v166, %v181
    %v186 = vadd.f32 %v167, %v182
    %v187 = vadd.f32 %v168, %v183
    %s188 = scalar_lea.vmem %s5, 7
    %v189 = vld [vmem:[%s188] sm:$0x1]
    %v190 = vmul.f32 %v189, %v179
    %v191 = vadd.f32 %v172, %v190
    %v192 = vld [vmem:[%s1] sm:$0xff]
    %v194 = vlaneseq
    %v195 = vshrl.u32 %v194, 7
    %v196 = vsub.s32 0, %v195
    %v197 = vrot.slane %v191, %v196
    %vm199 = vcmask 261120
    %v201 = vsel %vm199, %v192, 0
    %203 = vmatprep.subr.mxu0 0.0
    %204 = vmatpush1.msra.mxu0 %v184
    %205 = vmatprep.subr.mxu0 0.0
    %206 = vmatpush1.msra.mxu0 %v185
    %207 = vmatprep.subr.mxu0 0.0
    %208 = vmatpush1.msra.mxu0 %v186
    %209 = vmatprep.subr.mxu0 0.0
    %210 = vmatpush1.msra.mxu0 %v187
    %211 = vmatprep.subr.mxu0 0.0
    %212 = vmatpush1.msra.mxu0 0.0
    %213 = vmatprep.subr.mxu0 0.0
    %214 = vmatpush1.msra.mxu0 0.0
    %215 = vmatprep.subr.mxu0 0.0
    %216 = vmatpush1.msra.mxu0 0.0
    %217 = vmatprep.subr.mxu0 0.0
    %218 = vmatpush1.msra.mxu0 0.0
    %219 = vmatprep.subr.mxu0 0.0
    %220 = vmatpush1.msra.mxu0 0.0
    %221 = vmatprep.subr.mxu0 0.0
    %222 = vmatpush1.msra.mxu0 0.0
    %223 = vmatprep.subr.mxu0 0.0
    %224 = vmatpush1.msra.mxu0 0.0
    %225 = vmatprep.subr.mxu0 0.0
    %226 = vmatpush1.msra.mxu0 0.0
    %227 = vmatprep.subr.mxu0 0.0
    %228 = vmatpush1.msra.mxu0 0.0
    %229 = vmatprep.subr.mxu0 0.0
    %230 = vmatpush1.msra.mxu0 0.0
    %231 = vmatprep.subr.mxu0 0.0
    %232 = vmatpush1.msra.mxu0 0.0
    %233 = vmatprep.subr.mxu0 0.0
    %234 = vmatpush1.msra.mxu0 0.0
    %235 = vmatprep.subr.mxu0 0.0
    %236 = vmatpush1.msra.mxu0 0.0
    %237 = vmatprep.subr.mxu0 0.0
    %238 = vmatpush1.msra.mxu0 0.0
    %239 = vmatprep.subr.mxu0 0.0
    %240 = vmatpush1.msra.mxu0 0.0
    %241 = vmatprep.subr.mxu0 0.0
    %242 = vmatpush1.msra.mxu0 0.0
    %243 = vmatprep.subr.mxu0 0.0
    %244 = vmatpush1.msra.mxu0 0.0
    %245 = vmatprep.subr.mxu0 0.0
    %246 = vmatpush1.msra.mxu0 0.0
    %247 = vmatprep.subr.mxu0 0.0
    %248 = vmatpush1.msra.mxu0 0.0
    %249 = vmatprep.subr.mxu0 0.0
    %250 = vmatpush1.msra.mxu0 0.0
    %251 = vmatprep.subr.mxu0 0.0
    %252 = vmatpush1.msra.mxu0 0.0
    %253 = vmatprep.subr.mxu0 0.0
    %254 = vmatpush1.msra.mxu0 0.0
    %255 = vmatprep.subr.mxu0 0.0
    %256 = vmatpush1.msra.mxu0 0.0
    %257 = vmatprep.subr.mxu0 0.0
    %258 = vmatpush1.msra.mxu0 0.0
    %259 = vmatprep.subr.mxu0 0.0
    %260 = vmatpush1.msra.mxu0 0.0
    %261 = vmatprep.subr.mxu0 0.0
    %262 = vmatpush1.msra.mxu0 0.0
    %263 = vmatprep.subr.mxu0 0.0
    %264 = vmatpush1.msra.mxu0 0.0
    %265 = vmatprep.subr.mxu0 0.0
    %266 = vmatpush1.msra.mxu0 0.0
    %267 = vmatprep.mubr.f32.mxu0 0.0
    %268 = vmatmul.mubr.f32.gmra.mrb[0].mxu0 %v201
    %v269 = vpop.f32.mrb[0].mxu0
    %v270 = vadd.f32 %v197, %v269
    %v271 = vpop.f32.mrb[0].mxu0
    %272 = vdwg.mxu0
    %vm273 = vcmask 130048
    %274 = vst.msk [vmem:[#allocation5] sm:$0xff] %vm273, %v270
    // Predicated region
    $region30: #{tpu_custom_call.1} parent=1 // pred_check
      _
    $region31: #{tpu_custom_call.1} parent=1 // pred_check_branch
      %276 = sbr.rel (0) target = $region33
    $region32: #{tpu_custom_call.1} parent=1 // pred_region
      %s278 = ssub.s32 128, 128
      %279 = vsyncadd [#allocation3], %s278
      %s281 = sshll.u32 [#allocation5], 4
      %s282 = int_to_ptr.vmem [resolvable:$true] %s281
      %284 = dma.vmem_to_hbm [thread:$0]  %s282, 128, %s6, [#allocation3]
    $region33: #{tpu_custom_call.1} parent=1 // pred_fallthru
      _
    // Predicated region
    $region34: #{tpu_custom_call.1} parent=1 // pred_check
      _
    $region35: #{tpu_custom_call.1} parent=1 // pred_check_branch
      %286 = sbr.rel (0) target = $region37
    $region36: #{tpu_custom_call.1} parent=1 // pred_region
      %287 = dma.done [#allocation3], 128
    $region37: #{tpu_custom_call.1} parent=1 // pred_fallthru
      _
    %288 = vsyncpa [#allocation3], 1
    %289 = vsyncpa [#allocation4], 1

</llo_original>
